<compile_context>
chip_gen: v7x
topology: tpu7x:2x2x1
jax: 0.10.0
libtpu: 0.0.40
codegen_flags: <defaults>
</compile_context>

<pallas_src>
import jax
import jax.numpy as jnp
from jax.experimental import pallas as pl
from jax.experimental.pallas import tpu as pltpu

# ---------------- small deterministic hyperparameters ----------------
B = 2                        # batch
C = 4                        # image channels
IMG = 16                     # image spatial size
PS = 8                       # patch size
P = (IMG // PS) ** 2         # number of image tokens (img_feats) = 4
T = 8                        # text sequence length
S = T + P                    # sequence length after attn-mask concat = 12
H = 32                       # hidden size
A = 32                       # number of VQA answers
VOCAB = 50                   # toy vocab
VOCAB_PAD = 128              # lane-dense one-hot / embedding K dim
DPATCH = C * PS * PS         # flattened patch dim = 256
DPATCH_PAD = ((DPATCH + 127) // 128) * 128   # MXU K dim a multiple of 128
A_PAD = 128                  # lane-dense classifier / output width

_VMEM = pl.BlockSpec(memory_space=pltpu.MemorySpace.VMEM)


# ---------------- fused Pallas kernel ----------------
def _embed_pool_classify(patches_ref, onehot_ref, sel_ref,
                         pw_ref, pb_ref, emb_ref, cw_ref, cb_ref, stk_ref):
    """Shared body: returns padded logits [B, A_PAD] (lanes >= A are 0)."""
    # image patch embedding (MXU, bf16 operands, f32 accumulate)
    img2d = jnp.dot(patches_ref[...], pw_ref[...],
                    preferred_element_type=jnp.float32) + pb_ref[...]      # [B*P, H]

    # token embedding lookup fused as one-hot @ table; one-hot is 0/1 so the
    # pure-bf16 matmul is an exact row selection of the bf16 table.
    tok2d = jnp.dot(onehot_ref[...], emb_ref[...],
                    preferred_element_type=jnp.float32)                    # [B*T, H]

    # stack text + image activations into one small VMEM scratch so the
    # pre-normalized selection matrix does the masked MEAN in one MXU matmul.
    stk_ref[0:B * T, :] = tok2d
    stk_ref[B * T:B * S, :] = img2d
    pooled = jnp.dot(sel_ref[...], stk_ref[...],
                     preferred_element_type=jnp.float32)                   # [B, H]

    # classifier head (A padded to 128 lanes; padded weights/bias are zero)
    logits = jnp.dot(pooled.astype(jnp.bfloat16), cw_ref[...],
                     preferred_element_type=jnp.float32) + cb_ref[...]     # [B, A_PAD]
    return logits


def _fused_train_kernel(patches_ref, onehot_ref, sel_ref, lab_ref,
                        pw_ref, pb_ref, emb_ref, cw_ref, cb_ref,
                        out_ref, stk_ref):
    logits = _embed_pool_classify(patches_ref, onehot_ref, sel_ref,
                                  pw_ref, pb_ref, emb_ref, cw_ref, cb_ref, stk_ref)
    lab = lab_ref[...]                                                     # [B, A_PAD]
    lane = jax.lax.broadcasted_iota(jnp.int32, (B, A_PAD), 1)
    row = jax.lax.broadcasted_iota(jnp.int32, (B, A_PAD), 0)
    valid = lane < A

    # stable BCE-with-logits, mean over the A real answers (per sample).
    # NOTE: matches the previous revision's convention (plain elementwise mean);
    # if the reference module multiplies by labels.size(1), scale by A here.
    bce = (jnp.maximum(logits, 0.0) - logits * lab
           + jnp.log1p(jnp.exp(-jnp.abs(logits))))
    loss = jnp.where(valid, bce, 0.0).sum(axis=1, keepdims=True) * (1.0 / A)   # [B,1]

    # compute_score_with_logits: first-argmax one-hot * labels (torch.max semantics)
    lv = jnp.where(valid, logits, -jnp.inf)
    mx = lv.max(axis=1, keepdims=True)
    first_idx = jnp.min(jnp.where(lv == mx, lane, A_PAD), axis=1, keepdims=True)
    one_hot = (lane == first_idx).astype(jnp.float32)
    score = (one_hot * lab).sum(axis=1, keepdims=True)                     # [B,1]

    # batch reductions fused in-kernel (tiny XLU ops with slack)
    vqa_loss = loss.sum(axis=0, keepdims=True) * (1.0 / B)                 # [1,1]
    batch_score = score.sum(axis=0, keepdims=True) * (1.0 / B)             # [1,1]

    # single lane-dense output slab:
    #   rows      : logits in lanes [0, A)
    #   row 0     : lane A -> vqa_loss (already batch-mean), lane A+1 -> batch_score
    packed = jnp.where(valid, logits, 0.0)
    packed = packed + jnp.where((row == 0) & (lane == A), vqa_loss, 0.0)
    packed = packed + jnp.where((row == 0) & (lane == A + 1), batch_score, 0.0)
    out_ref[...] = packed


def _fused_eval_kernel(patches_ref, onehot_ref, sel_ref,
                       pw_ref, pb_ref, emb_ref, cw_ref, cb_ref,
                       out_ref, stk_ref):
    logits = _embed_pool_classify(patches_ref, onehot_ref, sel_ref,
                                  pw_ref, pb_ref, emb_ref, cw_ref, cb_ref, stk_ref)
    # padded lanes already carry zeros (zero weights/bias): one dense store
    out_ref[...] = logits


# ---------------- jitted glue (mirrors VQAModel.forward paths) ----------------
def _extract_patches(image):
    # NCHW [B, C, IMG, IMG] -> non-overlapping PSxPS patches -> bf16 [B*P, DPATCH_PAD]
    Bn = image.shape[0]
    x = image.reshape(Bn, C, IMG // PS, PS, IMG // PS, PS)
    x = x.transpose(0, 2, 4, 1, 3, 5)             # [B, gh, gw, C, ps, ps]
    patches = x.reshape(Bn * P, DPATCH)
    if DPATCH_PAD > DPATCH:
        patches = jnp.pad(patches, ((0, 0), (0, DPATCH_PAD - DPATCH)))
    return patches.astype(jnp.bfloat16)           # halve the largest input DMA


def _prep_common(image, input_ids, attention_mask):
    patches = _extract_patches(image)

    # lane-dense bf16 one-hot for the in-kernel MXU "gather" (vocab padded to 128)
    ids = input_ids.reshape(B * T, 1).astype(jnp.int32)
    onehot = (ids == jnp.arange(VOCAB_PAD, dtype=jnp.int32)[None, :]).astype(jnp.bfloat16)

    # VQAModel.construct_attn_mask: full mask = [text mask | ones for img feats]
    mask_full = jnp.concatenate(
        [attention_mask.astype(jnp.float32), jnp.ones((B, P), jnp.float32)], axis=1)
    # pre-normalized, merged block-diagonal selection matrix: pooling = one matmul
    denom = jnp.maximum(mask_full.sum(axis=1, keepdims=True), 1.0)   # all-zero-mask guard
    mask_n = mask_full / denom
    eye = jnp.eye(B, dtype=jnp.float32)
    sel_t = (eye[:, :, None] * mask_n[:, None, :T]).reshape(B, B * T)
    sel_i = (eye[:, :, None] * mask_n[:, None, T:]).reshape(B, B * P)
    sel = jnp.concatenate([sel_t, sel_i], axis=1)                    # [B, B*S]
    return patches, onehot, sel


@jax.jit
def _forward_train(params, image, input_ids, attention_mask, labels):
    patches, onehot, sel = _prep_common(image, input_ids, attention_mask)
    labels_pad = jnp.pad(labels.astype(jnp.float32), ((0, 0), (0, A_PAD - A)))
    packed = pl.pallas_call(
        _fused_train_kernel,
        out_shape=jax.ShapeDtypeStruct((B, A_PAD), jnp.float32),
        in_specs=[_VMEM] * 9,
        out_specs=_VMEM,
        scratch_shapes=[pltpu.VMEM((B * S, H), jnp.float32)],
    )(patches, onehot, sel, labels_pad,
      params["patch_w"], params["patch_b"], params["tok_emb"],
      params["cls_w"], params["cls_b"])
    logits = packed[:, :A]
    vqa_loss = packed[0, A]          # batch-mean BCE (computed in-kernel)
    batch_score = packed[0, A + 1]   # compute_score_with_logits(...).sum() / B
    return vqa_loss, logits, batch_score


@jax.jit
def _forward_eval(params, image, input_ids, attention_mask):
    patches, onehot, sel = _prep_common(image, input_ids, attention_mask)
    logits_full = pl.pallas_call(
        _fused_eval_kernel,
        out_shape=jax.ShapeDtypeStruct((B, A_PAD), jnp.float32),
        in_specs=[_VMEM] * 8,
        out_specs=_VMEM,
        scratch_shapes=[pltpu.VMEM((B * S, H), jnp.float32)],
    )(patches, onehot, sel,
      params["patch_w"], params["patch_b"], params["tok_emb"],
      params["cls_w"], params["cls_b"])
    return logits_full[:, :A]


# ---------------- parameter init (deterministic, synthetic) ----------------
def init_params(key):
    ks = jax.random.split(key, 3)
    scale = 0.02
    pw = jax.random.normal(ks[0], (DPATCH, H), jnp.float32) * scale
    pw = jnp.pad(pw, ((0, DPATCH_PAD - DPATCH), (0, 0)))        # zero K-pad rows
    emb = jax.random.normal(ks[1], (VOCAB, H), jnp.float32) * scale
    emb = jnp.pad(emb, ((0, VOCAB_PAD - VOCAB), (0, 0)))        # zero vocab-pad rows
    cw = jax.random.normal(ks[2], (H, A), jnp.float32) * scale
    cw = jnp.pad(cw, ((0, 0), (0, A_PAD - A)))                  # zero N-pad cols
    return {
        "patch_w": pw.astype(jnp.bfloat16),                      # MXU operand in bf16
        "patch_b": jnp.zeros((1, H), jnp.float32),
        "tok_emb": emb.astype(jnp.bfloat16),                     # bf16 table, K=128 lanes
        "cls_w": cw.astype(jnp.bfloat16),                        # MXU operand in bf16
        "cls_b": jnp.zeros((1, A_PAD), jnp.float32),
    }


# ---------------- model wrapper (mirrors VQAModel.forward) ----------------
class VQAModelPallas:
    """JAX/Pallas re-implementation of VQAModel(model, image_encoder)."""

    def __init__(self, params):
        self.params = params
        self.iter = 0
        self.training = True

    def forward(self, data):
        verbose = self.iter % 100 == 0
        self.iter += 1
        data = dict(data.items())
        assert "img_feats" not in data
        image = data.pop("image")   # image_encoder + construct_attn_mask run inside jit
        if self.training:
            for k in ["idx", "key", "question_id"]:
                data.pop(k)
            vqa_loss, logits, batch_score = _forward_train(
                self.params, image, data["input_ids"],
                data["attention_mask"], data["labels"])
            if verbose:
                _ = batch_score   # compute_score_with_logits acc (logged in torch)
            return {"vqa_loss": vqa_loss}
        else:
            data.pop("question_id"); data.pop("key"); data.pop("idx")
            # labels -> None in the reference eval path: loss/score are skipped
            logits = _forward_eval(self.params, image, data["input_ids"],
                                   data["attention_mask"])
            return logits


# ---------------- main ----------------
if __name__ == "__main__":
    key = jax.random.PRNGKey(0)
    kp, ki, kt, kl = jax.random.split(key, 4)

    params = init_params(kp)

    image = jax.random.normal(ki, (B, C, IMG, IMG), jnp.float32)        # NCHW
    input_ids = jax.random.randint(kt, (B, T), 0, VOCAB, jnp.int32)
    attention_mask = jnp.ones((B, T), jnp.float32)
    labels = (jax.random.uniform(kl, (B, A)) > 0.8).astype(jnp.float32)

    data = {
        "image": image,
        "input_ids": input_ids,
        "attention_mask": attention_mask,
        "labels": labels,
        "question_id": jnp.arange(B),
        "key": jnp.arange(B),
        "idx": jnp.arange(B),
    }

    model = VQAModelPallas(params)

    # training path -> {'vqa_loss': scalar}
    model.training = True
    out_train = model.forward(data)
    jax.block_until_ready(out_train["vqa_loss"])

    # eval path -> logits [B, A]
    model.training = False
    out_eval = model.forward(data)
    jax.block_until_ready(out_eval)

    assert out_eval.shape == (B, A)
    print("KERNEL_OK")
</pallas_src>

<mosaic_0001>
module attributes {stable_mosaic.version = 11 : i64} {
  func.func @_fused_train_kernel(%arg0: memref<8x256xbf16, #tpu.memory_space<vmem>>, %arg1: memref<16x128xbf16, #tpu.memory_space<vmem>>, %arg2: memref<2x24xf32, #tpu.memory_space<vmem>>, %arg3: memref<2x128xf32, #tpu.memory_space<vmem>>, %arg4: memref<256x32xbf16, #tpu.memory_space<vmem>>, %arg5: memref<1x32xf32, #tpu.memory_space<vmem>>, %arg6: memref<128x32xbf16, #tpu.memory_space<vmem>>, %arg7: memref<32x128xbf16, #tpu.memory_space<vmem>>, %arg8: memref<1x128xf32, #tpu.memory_space<vmem>>, %arg9: memref<2x128xf32, #tpu.memory_space<vmem>>, %arg10: memref<24x32xf32, #tpu.memory_space<vmem>>) attributes {dimension_semantics = [], scalar_prefetch = 0 : i64, scratch_operands = 1 : i64, tpu.core_type = #tpu.core_type<tc>} {
    %c0 = arith.constant 0 : index
    %c0_0 = arith.constant 0 : index
    %0 = vector.load %arg0[%c0, %c0_0] : memref<8x256xbf16, #tpu.memory_space<vmem>>, vector<8x256xbf16>
    %c0_1 = arith.constant 0 : index
    %c0_2 = arith.constant 0 : index
    %1 = vector.load %arg4[%c0_1, %c0_2] : memref<256x32xbf16, #tpu.memory_space<vmem>>, vector<256x32xbf16>
    %cst = arith.constant dense<0.000000e+00> : vector<8x32xf32>
    %2 = tpu.matmul %0, %1, %cst {dimension_numbers = #tpu.dot_dimension_numbers<[1], [0], [0], [1], [0, 0, 1, 1], [], []>} : vector<8x256xbf16>, vector<256x32xbf16>, vector<8x32xf32> -> vector<8x32xf32>
    %c0_3 = arith.constant 0 : index
    %c0_4 = arith.constant 0 : index
    %3 = vector.load %arg5[%c0_3, %c0_4] : memref<1x32xf32, #tpu.memory_space<vmem>>, vector<1x32xf32>
    %4 = vector.broadcast %3 : vector<1x32xf32> to vector<8x32xf32>
    %5 = arith.addf %2, %4 : vector<8x32xf32>
    %c0_5 = arith.constant 0 : index
    %c0_6 = arith.constant 0 : index
    %6 = vector.load %arg1[%c0_5, %c0_6] : memref<16x128xbf16, #tpu.memory_space<vmem>>, vector<16x128xbf16>
    %c0_7 = arith.constant 0 : index
    %c0_8 = arith.constant 0 : index
    %7 = vector.load %arg6[%c0_7, %c0_8] : memref<128x32xbf16, #tpu.memory_space<vmem>>, vector<128x32xbf16>
    %cst_9 = arith.constant dense<0.000000e+00> : vector<16x32xf32>
    %8 = tpu.matmul %6, %7, %cst_9 {dimension_numbers = #tpu.dot_dimension_numbers<[1], [0], [0], [1], [0, 0, 1, 1], [], []>} : vector<16x128xbf16>, vector<128x32xbf16>, vector<16x32xf32> -> vector<16x32xf32>
    %c0_10 = arith.constant 0 : index
    %c0_11 = arith.constant 0 : index
    %9 = vector.load %arg10[%c0_10, %c0_11] : memref<24x32xf32, #tpu.memory_space<vmem>>, vector<16x32xf32>
    tpu.vector_store %arg10[%c0_10, %c0_11], %8 {strides = array<i32>} : memref<24x32xf32, #tpu.memory_space<vmem>>, vector<16x32xf32>,
    %c16 = arith.constant 16 : index
    %c0_12 = arith.constant 0 : index
    %10 = vector.load %arg10[%c16, %c0_12] : memref<24x32xf32, #tpu.memory_space<vmem>>, vector<8x32xf32>
    tpu.vector_store %arg10[%c16, %c0_12], %5 {strides = array<i32>} : memref<24x32xf32, #tpu.memory_space<vmem>>, vector<8x32xf32>,
    %c0_13 = arith.constant 0 : index
    %c0_14 = arith.constant 0 : index
    %11 = vector.load %arg2[%c0_13, %c0_14] : memref<2x24xf32, #tpu.memory_space<vmem>>, vector<2x24xf32>
    %c0_15 = arith.constant 0 : index
    %c0_16 = arith.constant 0 : index
    %12 = vector.load %arg10[%c0_15, %c0_16] : memref<24x32xf32, #tpu.memory_space<vmem>>, vector<24x32xf32>
    %cst_17 = arith.constant dense<0.000000e+00> : vector<2x32xf32>
    %13 = tpu.matmul %11, %12, %cst_17 {dimension_numbers = #tpu.dot_dimension_numbers<[1], [0], [0], [1], [0, 0, 1, 1], [], []>} : vector<2x24xf32>, vector<24x32xf32>, vector<2x32xf32> -> vector<2x32xf32>
    %14 = arith.truncf %13 : vector<2x32xf32> to vector<2x32xbf16>
    %c0_18 = arith.constant 0 : index
    %c0_19 = arith.constant 0 : index
    %15 = vector.load %arg7[%c0_18, %c0_19] : memref<32x128xbf16, #tpu.memory_space<vmem>>, vector<32x128xbf16>
    %cst_20 = arith.constant dense<0.000000e+00> : vector<2x128xf32>
    %16 = tpu.matmul %14, %15, %cst_20 {dimension_numbers = #tpu.dot_dimension_numbers<[1], [0], [0], [1], [0, 0, 1, 1], [], []>} : vector<2x32xbf16>, vector<32x128xbf16>, vector<2x128xf32> -> vector<2x128xf32>
    %c0_21 = arith.constant 0 : index
    %c0_22 = arith.constant 0 : index
    %17 = vector.load %arg8[%c0_21, %c0_22] : memref<1x128xf32, #tpu.memory_space<vmem>>, vector<1x128xf32>
    %18 = vector.broadcast %17 : vector<1x128xf32> to vector<2x128xf32>
    %19 = arith.addf %16, %18 : vector<2x128xf32>
    %c0_23 = arith.constant 0 : index
    %c0_24 = arith.constant 0 : index
    %20 = vector.load %arg3[%c0_23, %c0_24] : memref<2x128xf32, #tpu.memory_space<vmem>>, vector<2x128xf32>
    %21 = tpu.iota {dimensions = array<i32: 1>} : vector<2x128xi32>
    %22 = tpu.iota {dimensions = array<i32: 0>} : vector<2x128xi32>
    %c32_i32 = arith.constant 32 : i32
    %23 = vector.broadcast %c32_i32 : i32 to vector<2x128xi32>
    %24 = arith.cmpi slt, %21, %23 : vector<2x128xi32>
    %cst_25 = arith.constant 0.000000e+00 : f32
    %25 = vector.broadcast %cst_25 : f32 to vector<2x128xf32>
    %26 = arith.maximumf %19, %25 : vector<2x128xf32>
    %27 = arith.mulf %19, %20 : vector<2x128xf32>
    %28 = arith.subf %26, %27 : vector<2x128xf32>
    %29 = math.absf %19 : vector<2x128xf32>
    %cst_26 = arith.constant 0.000000e+00 : f32
    %30 = vector.broadcast %cst_26 : f32 to vector<2x128xf32>
    %31 = arith.subf %30, %29 : vector<2x128xf32>
    %32 = math.exp %31 : vector<2x128xf32>
    %33 = math.log1p %32 : vector<2x128xf32>
    %34 = arith.addf %28, %33 : vector<2x128xf32>
    %cst_27 = arith.constant 0.000000e+00 : f32
    %35 = vector.broadcast %cst_27 : f32 to vector<2x128xf32>
    %36 = arith.select %24, %34, %35 : vector<2x128xi1>, vector<2x128xf32>
    %cst_28 = arith.constant dense<0.000000e+00> : vector<2xf32>
    %37 = vector.multi_reduction <add>, %36, %cst_28 [1] : vector<2x128xf32> to vector<2xf32>
    %38 = vector.shape_cast %37 : vector<2xf32> to vector<2x1xf32>
    %cst_29 = arith.constant 3.125000e-02 : f32
    %39 = vector.broadcast %cst_29 : f32 to vector<2x1xf32>
    %40 = arith.mulf %38, %39 : vector<2x1xf32>
    %cst_30 = arith.constant 0xFF800000 : f32
    %41 = vector.broadcast %cst_30 : f32 to vector<2x128xf32>
    %42 = arith.select %24, %19, %41 : vector<2x128xi1>, vector<2x128xf32>
    %cst_31 = arith.constant dense<0xFF800000> : vector<2xf32>
    %43 = vector.multi_reduction <maximumf>, %42, %cst_31 [1] : vector<2x128xf32> to vector<2xf32>
    %44 = vector.shape_cast %43 : vector<2xf32> to vector<2x1xf32>
    %45 = vector.broadcast %44 : vector<2x1xf32> to vector<2x128xf32>
    %46 = arith.cmpf oeq, %42, %45 : vector<2x128xf32>
    %c128_i32 = arith.constant 128 : i32
    %47 = vector.broadcast %c128_i32 : i32 to vector<2x128xi32>
    %48 = arith.select %46, %21, %47 : vector<2x128xi1>, vector<2x128xi32>
    %cst_32 = arith.constant dense<2147483647> : vector<2xi32>
    %49 = vector.multi_reduction <minsi>, %48, %cst_32 [1] : vector<2x128xi32> to vector<2xi32>
    %50 = vector.shape_cast %49 : vector<2xi32> to vector<2x1xi32>
    %51 = vector.broadcast %50 : vector<2x1xi32> to vector<2x128xi32>
    %52 = arith.cmpi eq, %21, %51 : vector<2x128xi32>
    %53 = arith.extui %52 : vector<2x128xi1> to vector<2x128xi32>
    %54 = arith.sitofp %53 : vector<2x128xi32> to vector<2x128xf32>
    %55 = arith.mulf %54, %20 : vector<2x128xf32>
    %cst_33 = arith.constant dense<0.000000e+00> : vector<2xf32>
    %56 = vector.multi_reduction <add>, %55, %cst_33 [1] : vector<2x128xf32> to vector<2xf32>
    %57 = vector.shape_cast %56 : vector<2xf32> to vector<2x1xf32>
    %cst_34 = arith.constant dense<0.000000e+00> : vector<1xf32>
    %58 = vector.multi_reduction <add>, %40, %cst_34 [0] : vector<2x1xf32> to vector<1xf32>
    %59 = vector.shape_cast %58 : vector<1xf32> to vector<1x1xf32>
    %cst_35 = arith.constant 5.000000e-01 : f32
    %60 = vector.broadcast %cst_35 : f32 to vector<1x1xf32>
    %61 = arith.mulf %59, %60 : vector<1x1xf32>
    %cst_36 = arith.constant dense<0.000000e+00> : vector<1xf32>
    %62 = vector.multi_reduction <add>, %57, %cst_36 [0] : vector<2x1xf32> to vector<1xf32>
    %63 = vector.shape_cast %62 : vector<1xf32> to vector<1x1xf32>
    %cst_37 = arith.constant 5.000000e-01 : f32
    %64 = vector.broadcast %cst_37 : f32 to vector<1x1xf32>
    %65 = arith.mulf %63, %64 : vector<1x1xf32>
    %cst_38 = arith.constant 0.000000e+00 : f32
    %66 = vector.broadcast %cst_38 : f32 to vector<2x128xf32>
    %67 = arith.select %24, %19, %66 : vector<2x128xi1>, vector<2x128xf32>
    %c0_i32 = arith.constant 0 : i32
    %68 = vector.broadcast %c0_i32 : i32 to vector<2x128xi32>
    %69 = arith.cmpi eq, %22, %68 : vector<2x128xi32>
    %c32_i32_39 = arith.constant 32 : i32
    %70 = vector.broadcast %c32_i32_39 : i32 to vector<2x128xi32>
    %71 = arith.cmpi eq, %21, %70 : vector<2x128xi32>
    %72 = arith.andi %69, %71 : vector<2x128xi1>
    %cst_40 = arith.constant 0.000000e+00 : f32
    %73 = vector.shape_cast %61 : vector<1x1xf32> to vector<1x1xf32>
    %74 = vector.broadcast %73 : vector<1x1xf32> to vector<2x128xf32>
    %75 = vector.broadcast %cst_40 : f32 to vector<2x128xf32>
    %76 = arith.select %72, %74, %75 : vector<2x128xi1>, vector<2x128xf32>
    %77 = arith.addf %67, %76 : vector<2x128xf32>
    %c0_i32_41 = arith.constant 0 : i32
    %78 = vector.broadcast %c0_i32_41 : i32 to vector<2x128xi32>
    %79 = arith.cmpi eq, %22, %78 : vector<2x128xi32>
    %c33_i32 = arith.constant 33 : i32
    %80 = vector.broadcast %c33_i32 : i32 to vector<2x128xi32>
    %81 = arith.cmpi eq, %21, %80 : vector<2x128xi32>
    %82 = arith.andi %79, %81 : vector<2x128xi1>
    %cst_42 = arith.constant 0.000000e+00 : f32
    %83 = vector.shape_cast %65 : vector<1x1xf32> to vector<1x1xf32>
    %84 = vector.broadcast %83 : vector<1x1xf32> to vector<2x128xf32>
    %85 = vector.broadcast %cst_42 : f32 to vector<2x128xf32>
    %86 = arith.select %82, %84, %85 : vector<2x128xi1>, vector<2x128xf32>
    %87 = arith.addf %77, %86 : vector<2x128xf32>
    %c0_43 = arith.constant 0 : index
    %c0_44 = arith.constant 0 : index
    %88 = vector.load %arg9[%c0_43, %c0_44] : memref<2x128xf32, #tpu.memory_space<vmem>>, vector<2x128xf32>
    tpu.vector_store %arg9[%c0_43, %c0_44], %87 {strides = array<i32>} : memref<2x128xf32, #tpu.memory_space<vmem>>, vector<2x128xf32>,
    return
  }
}

</mosaic_0001>

<llo_original>
// kernel: eq.9
$region0: #{eq.9}
  %s0 = inlined_call_operand.vmem [shape: s32[2,8], index: 0, kind: input, shape index: {}]
  %s1 = inlined_call_operand.vmem [shape: s32[16], index: 1, kind: output, shape index: {}]
  $region1: #{eq.9} parent=0
    #allocation0 [shape = 'u8[4096]{0}', space=vmem, size = 0x1000, scoped, tag = 'scoped mem for output reshape']
    #allocation1 [shape = 'u8[4096]{0}', space=vmem, size = 0x1000, scoped, tag = 'scoped mem for input reshape']
    %s3 = sshllo.u32 0, 2
    %v4 = vld [vmem:[%s0] sm:%s3]
    %5 = vst [vmem:[#allocation1] sm:%s3] %v4
    %v6 = vld [vmem:[#allocation1] sm:$0x1]
    %vm7 = vcmask 64512
    %8 = vst.msk [vmem:[#allocation0] sm:$0x1] %vm7, %v6
    %s9 = scalar_lea.vmem [#allocation1], 1
    %v10 = vld [vmem:[%s9] sm:$0x1]
    %11 = vrot.lane.b32.xlu0 %v10, 8
    %v12 = vpop.permute.xlu0 %11
    %vm13 = vcmask 130112
    %14 = vst.msk [vmem:[#allocation0] sm:$0x1] %vm13, %v12
    %s16 = sshllo.u32 0, 1
    %v18 = vld [vmem:[#allocation0] sm:%s16]
    %s19 = sshllo.u32 0, 1
    %20 = vst [vmem:[%s1] sm:%s19] %v18

// kernel: _forward_train.1
$region0: #{_forward_train.1}
  #allocation0 [shape = 'u32[]', space=smem, size = 0x4, offset = 0x4, fixed_abs, tag = 'smem constant byte address 0x4 - core index']
  #allocation1 [shape = 'u32[144,128]{1,0:T(1,128)}', space=vmem, size = 0x12000, scoped, tag = 'internal scratch']
  #allocation2 [shape = 'f32[24,32]{1,0:T(8,128)}', space=vmem, size = 0x3000, scoped, tag = 'scratch operand']
  %s0 = inlined_call_operand.vmem [shape: bf16[8,256], index: 0, kind: input, shape index: {}]
  %s1 = inlined_call_operand.vmem [shape: bf16[16,128], index: 1, kind: input, shape index: {}]
  %s2 = inlined_call_operand.vmem [shape: f32[2,24], index: 2, kind: input, shape index: {}]
  %s3 = inlined_call_operand.vmem [shape: f32[2,128], index: 3, kind: input, shape index: {}]
  %s4 = inlined_call_operand.vmem [shape: bf16[256,32], index: 4, kind: input, shape index: {}]
  %s5 = inlined_call_operand.vmem [shape: f32[1,32], index: 5, kind: input, shape index: {}]
  %s6 = inlined_call_operand.vmem [shape: bf16[128,32], index: 6, kind: input, shape index: {}]
  %s7 = inlined_call_operand.vmem [shape: bf16[32,128], index: 7, kind: input, shape index: {}]
  %s8 = inlined_call_operand.vmem [shape: f32[1,128], index: 8, kind: input, shape index: {}]
  %s9 = inlined_call_operand.vmem [shape: f32[2,128], index: 9, kind: output, shape index: {}]
  %s10 = sld [smem:[#allocation0]]
  $region46: #{_forward_train.1} parent=0
    _
  %s12 = ssub.s32 1, %s10
  %s13 = scalar_select 0, %s12, %s10
  // Predicated region
  $region2: #{_forward_train.1} parent=0 // pred_check
    _
  $region3: #{_forward_train.1} parent=0 // pred_check_branch
    %15 = sbr.rel (0) target = $region5
  $region4: #{_forward_train.1} parent=0 // pred_region
    _
  $region5: #{_forward_train.1} parent=0 // pred_fallthru
    _
  // Predicated region
  $region6: #{_forward_train.1} parent=0 // pred_check
    _
  $region7: #{_forward_train.1} parent=0 // pred_check_branch
    %17 = sbr.rel (0) target = $region9
  $region8: #{_forward_train.1} parent=0 // pred_region
    _
  $region9: #{_forward_train.1} parent=0 // pred_fallthru
    _
  // Predicated region
  $region10: #{_forward_train.1} parent=0 // pred_check
    _
  $region11: #{_forward_train.1} parent=0 // pred_check_branch
    %19 = sbr.rel (0) target = $region13
  $region12: #{_forward_train.1} parent=0 // pred_region
    _
  $region13: #{_forward_train.1} parent=0 // pred_fallthru
    _
  // Predicated region
  $region14: #{_forward_train.1} parent=0 // pred_check
    _
  $region15: #{_forward_train.1} parent=0 // pred_check_branch
    %21 = sbr.rel (0) target = $region17
  $region16: #{_forward_train.1} parent=0 // pred_region
    _
  $region17: #{_forward_train.1} parent=0 // pred_fallthru
    _
  // Predicated region
  $region18: #{_forward_train.1} parent=0 // pred_check
    _
  $region19: #{_forward_train.1} parent=0 // pred_check_branch
    %23 = sbr.rel (0) target = $region21
  $region20: #{_forward_train.1} parent=0 // pred_region
    _
  $region21: #{_forward_train.1} parent=0 // pred_fallthru
    _
  // Predicated region
  $region22: #{_forward_train.1} parent=0 // pred_check
    _
  $region23: #{_forward_train.1} parent=0 // pred_check_branch
    %25 = sbr.rel (0) target = $region25
  $region24: #{_forward_train.1} parent=0 // pred_region
    _
  $region25: #{_forward_train.1} parent=0 // pred_fallthru
    _
  // Predicated region
  $region26: #{_forward_train.1} parent=0 // pred_check
    _
  $region27: #{_forward_train.1} parent=0 // pred_check_branch
    %27 = sbr.rel (0) target = $region29
  $region28: #{_forward_train.1} parent=0 // pred_region
    _
  $region29: #{_forward_train.1} parent=0 // pred_fallthru
    _
  // Predicated region
  $region30: #{_forward_train.1} parent=0 // pred_check
    _
  $region31: #{_forward_train.1} parent=0 // pred_check_branch
    %29 = sbr.rel (0) target = $region33
  $region32: #{_forward_train.1} parent=0 // pred_region
    _
  $region33: #{_forward_train.1} parent=0 // pred_fallthru
    _
  // Predicated region
  $region34: #{_forward_train.1} parent=0 // pred_check
    _
  $region35: #{_forward_train.1} parent=0 // pred_check_branch
    %31 = sbr.rel (0) target = $region37
  $region36: #{_forward_train.1} parent=0 // pred_region
    _
  $region37: #{_forward_train.1} parent=0 // pred_fallthru
    _
  %v33 = vld [vmem:[%s0] sm:$0xff]
  %v34 = vld [vmem:[%s4] sm:$0xf]
  %v35 = vld [vmem:[%s4 + $0x4] sm:$0xf]
  %v36 = vld [vmem:[%s4 + $0x8] sm:$0xf]
  %v37 = vld [vmem:[%s4 + $0xc] sm:$0xf]
  %v38 = vld [vmem:[%s4 + $0x10] sm:$0xf]
  %v39 = vld [vmem:[%s4 + $0x14] sm:$0xf]
  %v40 = vld [vmem:[%s4 + $0x18] sm:$0xf]
  %v41 = vld [vmem:[%s4 + $0x1c] sm:$0xf]
  %v42 = vld [vmem:[%s4 + $0x20] sm:$0xf]
  %v43 = vld [vmem:[%s4 + $0x24] sm:$0xf]
  %v44 = vld [vmem:[%s4 + $0x28] sm:$0xf]
  %v45 = vld [vmem:[%s4 + $0x2c] sm:$0xf]
  %v46 = vld [vmem:[%s4 + $0x30] sm:$0xf]
  %v47 = vld [vmem:[%s4 + $0x34] sm:$0xf]
  %v48 = vld [vmem:[%s4 + $0x38] sm:$0xf]
  %v49 = vld [vmem:[%s4 + $0x3c] sm:$0xf]
  %v50 = vld [vmem:[%s4 + $0x40] sm:$0xf]
  %v51 = vld [vmem:[%s4 + $0x44] sm:$0xf]
  %v52 = vld [vmem:[%s4 + $0x48] sm:$0xf]
  %v53 = vld [vmem:[%s4 + $0x4c] sm:$0xf]
  %v54 = vld [vmem:[%s4 + $0x50] sm:$0xf]
  %v55 = vld [vmem:[%s4 + $0x54] sm:$0xf]
  %v56 = vld [vmem:[%s4 + $0x58] sm:$0xf]
  %v57 = vld [vmem:[%s4 + $0x5c] sm:$0xf]
  %v58 = vld [vmem:[%s4 + $0x60] sm:$0xf]
  %v59 = vld [vmem:[%s4 + $0x64] sm:$0xf]
  %v60 = vld [vmem:[%s4 + $0x68] sm:$0xf]
  %v61 = vld [vmem:[%s4 + $0x6c] sm:$0xf]
  %v62 = vld [vmem:[%s4 + $0x70] sm:$0xf]
  %v63 = vld [vmem:[%s4 + $0x74] sm:$0xf]
  %v64 = vld [vmem:[%s4 + $0x78] sm:$0xf]
  %v65 = vld [vmem:[%s4 + $0x7c] sm:$0xf]
  %v66 = vld [vmem:[%s5] sm:$0x1]
  %v68 = vlaneseq
  %v69 = vshrl.u32 %v68, 7
  %v70 = vsub.s32 0, %v69
  %v71 = vrot.slane %v66, %v70
  %v74 = vunpack.c.l.b16 %v33
  %v75 = vunpack.c.h.b16 %v33
  %v76 = vpack.c.b16 %v74, %v74
  %v77 = vpack.c.b16 %v75, %v75
  %v112 = vunpack.c.l.b16 %v34
  %v113 = vunpack.c.l.b16 %v35
  %v114 = vunpack.c.l.b16 %v36
  %v115 = vunpack.c.l.b16 %v37
  %v116 = vunpack.c.l.b16 %v38
  %v117 = vunpack.c.l.b16 %v39
  %v118 = vunpack.c.l.b16 %v40
  %v119 = vunpack.c.l.b16 %v41
  %v120 = vunpack.c.l.b16 %v42
  %v121 = vunpack.c.l.b16 %v43
  %v122 = vunpack.c.l.b16 %v44
  %v123 = vunpack.c.l.b16 %v45
  %v124 = vunpack.c.l.b16 %v46
  %v125 = vunpack.c.l.b16 %v47
  %v126 = vunpack.c.l.b16 %v48
  %v127 = vunpack.c.l.b16 %v49
  %v128 = vunpack.c.l.b16 %v50
  %v129 = vunpack.c.l.b16 %v51
  %v130 = vunpack.c.l.b16 %v52
  %v131 = vunpack.c.l.b16 %v53
  %v132 = vunpack.c.l.b16 %v54
  %v133 = vunpack.c.l.b16 %v55
  %v134 = vunpack.c.l.b16 %v56
  %v135 = vunpack.c.l.b16 %v57
  %v136 = vunpack.c.l.b16 %v58
  %v137 = vunpack.c.l.b16 %v59
  %v138 = vunpack.c.l.b16 %v60
  %v139 = vunpack.c.l.b16 %v61
  %v140 = vunpack.c.l.b16 %v62
  %v141 = vunpack.c.l.b16 %v63
  %v142 = vunpack.c.l.b16 %v64
  %v143 = vunpack.c.l.b16 %v65
  %v144 = vpack.c.b16 %v113, %v112
  %v145 = vpack.c.b16 %v115, %v114
  %v146 = vpack.c.b16 %v117, %v116
  %v147 = vpack.c.b16 %v119, %v118
  %v148 = vpack.c.b16 %v121, %v120
  %v149 = vpack.c.b16 %v123, %v122
  %v150 = vpack.c.b16 %v125, %v124
  %v151 = vpack.c.b16 %v127, %v126
  %v152 = vpack.c.b16 %v129, %v128
  %v153 = vpack.c.b16 %v131, %v130
  %v154 = vpack.c.b16 %v133, %v132
  %v155 = vpack.c.b16 %v135, %v134
  %v156 = vpack.c.b16 %v137, %v136
  %v157 = vpack.c.b16 %v139, %v138
  %v158 = vpack.c.b16 %v141, %v140
  %v159 = vpack.c.b16 %v143, %v142
  %176 = vmatprep.subr.bf16.mxu0 0
  %177 = vmatpush1.bf16.msra.mxu0 %v144
  %178 = vmatprep.subr.bf16.mxu0 0
  %179 = vmatpush1.bf16.msra.mxu0 %v145
  %180 = vmatprep.subr.bf16.mxu0 0
  %181 = vmatpush1.bf16.msra.mxu0 %v146
  %182 = vmatprep.subr.bf16.mxu0 0
  %183 = vmatpush1.bf16.msra.mxu0 %v147
  %184 = vmatprep.subr.bf16.mxu0 0
  %185 = vmatpush1.bf16.msra.mxu0 %v148
  %186 = vmatprep.subr.bf16.mxu0 0
  %187 = vmatpush1.bf16.msra.mxu0 %v149
  %188 = vmatprep.subr.bf16.mxu0 0
  %189 = vmatpush1.bf16.msra.mxu0 %v150
  %190 = vmatprep.subr.bf16.mxu0 0
  %191 = vmatpush1.bf16.msra.mxu0 %v151
  %192 = vmatprep.subr.bf16.mxu0 0
  %193 = vmatpush1.bf16.msra.mxu0 %v152
  %194 = vmatprep.subr.bf16.mxu0 0
  %195 = vmatpush1.bf16.msra.mxu0 %v153
  %196 = vmatprep.subr.bf16.mxu0 0
  %197 = vmatpush1.bf16.msra.mxu0 %v154
  %198 = vmatprep.subr.bf16.mxu0 0
  %199 = vmatpush1.bf16.msra.mxu0 %v155
  %200 = vmatprep.subr.bf16.mxu0 0
  %201 = vmatpush1.bf16.msra.mxu0 %v156
  %202 = vmatprep.subr.bf16.mxu0 0
  %203 = vmatpush1.bf16.msra.mxu0 %v157
  %204 = vmatprep.subr.bf16.mxu0 0
  %205 = vmatpush1.bf16.msra.mxu0 %v158
  %206 = vmatprep.subr.bf16.mxu0 0
  %207 = vmatpush1.bf16.msra.mxu0 %v159
  %208 = vmatprep.mubr.bf16.mxu0 %v77
  %209 = vmatmul.mubr.bf16.gmra.mrb[0].mxu0 %v76
  %v210 = vpop.f32.mrb[0].mxu0
  %v211 = vadd.f32 %v71, %v210
  %v212 = vpop.f32.mrb[0].mxu0
  %v213 = vpop.f32.mrb[0].mxu0
  %v214 = vpop.f32.mrb[0].mxu0
  %215 = vdwg.mxu0
  %v216 = vld [vmem:[%s1] sm:$0xf]
  %v217 = vld [vmem:[%s1 + $0x4] sm:$0xf]
  %v218 = vld [vmem:[%s6] sm:$0xf]
  %v219 = vld [vmem:[%s6 + $0x4] sm:$0xf]
  %v220 = vld [vmem:[%s6 + $0x8] sm:$0xf]
  %v221 = vld [vmem:[%s6 + $0xc] sm:$0xf]
  %v222 = vld [vmem:[%s6 + $0x10] sm:$0xf]
  %v223 = vld [vmem:[%s6 + $0x14] sm:$0xf]
  %v224 = vld [vmem:[%s6 + $0x18] sm:$0xf]
  %v225 = vld [vmem:[%s6 + $0x1c] sm:$0xf]
  %v226 = vld [vmem:[%s6 + $0x20] sm:$0xf]
  %v227 = vld [vmem:[%s6 + $0x24] sm:$0xf]
  %v228 = vld [vmem:[%s6 + $0x28] sm:$0xf]
  %v229 = vld [vmem:[%s6 + $0x2c] sm:$0xf]
  %v230 = vld [vmem:[%s6 + $0x30] sm:$0xf]
  %v231 = vld [vmem:[%s6 + $0x34] sm:$0xf]
  %v232 = vld [vmem:[%s6 + $0x38] sm:$0xf]
  %v233 = vld [vmem:[%s6 + $0x3c] sm:$0xf]
  %v236 = vunpack.c.l.b16 %v216
  %v237 = vunpack.c.l.b16 %v217
  %v238 = vpack.c.b16 %v237, %v236
  %v256 = vunpack.c.l.b16 %v218
  %v257 = vunpack.c.l.b16 %v219
  %v258 = vunpack.c.l.b16 %v220
  %v259 = vunpack.c.l.b16 %v221
  %v260 = vunpack.c.l.b16 %v222
  %v261 = vunpack.c.l.b16 %v223
  %v262 = vunpack.c.l.b16 %v224
  %v263 = vunpack.c.l.b16 %v225
  %v264 = vunpack.c.l.b16 %v226
  %v265 = vunpack.c.l.b16 %v227
  %v266 = vunpack.c.l.b16 %v228
  %v267 = vunpack.c.l.b16 %v229
  %v268 = vunpack.c.l.b16 %v230
  %v269 = vunpack.c.l.b16 %v231
  %v270 = vunpack.c.l.b16 %v232
  %v271 = vunpack.c.l.b16 %v233
  %v272 = vpack.c.b16 %v257, %v256
  %v273 = vpack.c.b16 %v259, %v258
  %v274 = vpack.c.b16 %v261, %v260
  %v275 = vpack.c.b16 %v263, %v262
  %v276 = vpack.c.b16 %v265, %v264
  %v277 = vpack.c.b16 %v267, %v266
  %v278 = vpack.c.b16 %v269, %v268
  %v279 = vpack.c.b16 %v271, %v270
  %288 = vmatprep.subr.bf16.mxu0 0
  %289 = vmatpush1.bf16.msra.mxu0 %v272
  %290 = vmatprep.subr.bf16.mxu0 0
  %291 = vmatpush1.bf16.msra.mxu0 %v273
  %292 = vmatprep.subr.bf16.mxu0 0
  %293 = vmatpush1.bf16.msra.mxu0 %v274
  %294 = vmatprep.subr.bf16.mxu0 0
  %295 = vmatpush1.bf16.msra.mxu0 %v275
  %296 = vmatprep.subr.bf16.mxu0 0
  %297 = vmatpush1.bf16.msra.mxu0 %v276
  %298 = vmatprep.subr.bf16.mxu0 0
  %299 = vmatpush1.bf16.msra.mxu0 %v277
  %300 = vmatprep.subr.bf16.mxu0 0
  %301 = vmatpush1.bf16.msra.mxu0 %v278
  %302 = vmatprep.subr.bf16.mxu0 0
  %303 = vmatpush1.bf16.msra.mxu0 %v279
  %304 = vmatprep.subr.bf16.mxu0 0
  %305 = vmatpush1.bf16.msra.mxu0 0
  %306 = vmatprep.subr.bf16.mxu0 0
  %307 = vmatpush1.bf16.msra.mxu0 0
  %308 = vmatprep.subr.bf16.mxu0 0
  %309 = vmatpush1.bf16.msra.mxu0 0
  %310 = vmatprep.subr.bf16.mxu0 0
  %311 = vmatpush1.bf16.msra.mxu0 0
  %312 = vmatprep.subr.bf16.mxu0 0
  %313 = vmatpush1.bf16.msra.mxu0 0
  %314 = vmatprep.subr.bf16.mxu0 0
  %315 = vmatpush1.bf16.msra.mxu0 0
  %316 = vmatprep.subr.bf16.mxu0 0
  %317 = vmatpush1.bf16.msra.mxu0 0
  %318 = vmatprep.subr.bf16.mxu0 0
  %319 = vmatpush1.bf16.msra.mxu0 0
  %320 = vmatprep.mubr.bf16.mxu0 0
  %321 = vmatmul.mubr.bf16.gmra.mrb[0].mxu0 %v238
  %v322 = vpop.f32.mrb[0].mxu0
  %v323 = vadd.f32 0.0, %v322
  %v324 = vpop.f32.mrb[0].mxu0
  %v325 = vpop.f32.mrb[0].mxu0
  %v326 = vadd.f32 0.0, %v325
  %v327 = vpop.f32.mrb[0].mxu0
  %328 = vdwg.mxu0
  %vm329 = vcmask 261120
  %330 = vst.msk [vmem:[#allocation2] sm:$0xff] %vm329, %v323
  %331 = vst.msk [vmem:[#allocation2 + $0x8] sm:$0xff] %vm329, %v326
  %332 = vst.msk [vmem:[#allocation2 + $0x10] sm:$0xff] %vm329, %v211
  %v333 = vld [vmem:[%s2] sm:$0x3]
  %v334 = vld [vmem:[#allocation2] sm:$0xff]
  %v335 = vld [vmem:[#allocation2 + $0x8] sm:$0xff]
  %v336 = vld [vmem:[#allocation2 + $0x10] sm:$0xff]
  %vm337 = vcmask 195584
  %v339 = vsel %vm337, %v333, 0
  %341 = vmatprep.subr.mxu0 0.0
  %342 = vmatpush1.msra.mxu0 %v334
  %343 = vmatprep.subr.mxu0 0.0
  %344 = vmatpush1.msra.mxu0 %v335
  %345 = vmatprep.subr.mxu0 0.0
  %346 = vmatpush1.msra.mxu0 %v336
  %347 = vmatprep.subr.mxu0 0.0
  %348 = vmatpush1.msra.mxu0 0.0
  %349 = vmatprep.subr.mxu0 0.0
  %350 = vmatpush1.msra.mxu0 0.0
  %351 = vmatprep.subr.mxu0 0.0
  %352 = vmatpush1.msra.mxu0 0.0
  %353 = vmatprep.subr.mxu0 0.0
  %354 = vmatpush1.msra.mxu0 0.0
  %355 = vmatprep.subr.mxu0 0.0
  %356 = vmatpush1.msra.mxu0 0.0
  %357 = vmatprep.subr.mxu0 0.0
  %358 = vmatpush1.msra.mxu0 0.0
  %359 = vmatprep.subr.mxu0 0.0
  %360 = vmatpush1.msra.mxu0 0.0
  %361 = vmatprep.subr.mxu0 0.0
  %362 = vmatpush1.msra.mxu0 0.0
  %363 = vmatprep.subr.mxu0 0.0
  %364 = vmatpush1.msra.mxu0 0.0
  %365 = vmatprep.subr.mxu0 0.0
  %366 = vmatpush1.msra.mxu0 0.0
  %367 = vmatprep.subr.mxu0 0.0
  %368 = vmatpush1.msra.mxu0 0.0
  %369 = vmatprep.subr.mxu0 0.0
  %370 = vmatpush1.msra.mxu0 0.0
  %371 = vmatprep.subr.mxu0 0.0
  %372 = vmatpush1.msra.mxu0 0.0
  %373 = vmatprep.subr.mxu0 0.0
  %374 = vmatpush1.msra.mxu0 0.0
  %375 = vmatprep.subr.mxu0 0.0
  %376 = vmatpush1.msra.mxu0 0.0
  %377 = vmatprep.subr.mxu0 0.0
  %378 = vmatpush1.msra.mxu0 0.0
  %379 = vmatprep.subr.mxu0 0.0
  %380 = vmatpush1.msra.mxu0 0.0
  %381 = vmatprep.subr.mxu0 0.0
  %382 = vmatpush1.msra.mxu0 0.0
  %383 = vmatprep.subr.mxu0 0.0
  %384 = vmatpush1.msra.mxu0 0.0
  %385 = vmatprep.subr.mxu0 0.0
  %386 = vmatpush1.msra.mxu0 0.0
  %387 = vmatprep.subr.mxu0 0.0
  %388 = vmatpush1.msra.mxu0 0.0
  %389 = vmatprep.subr.mxu0 0.0
  %390 = vmatpush1.msra.mxu0 0.0
  %391 = vmatprep.subr.mxu0 0.0
  %392 = vmatpush1.msra.mxu0 0.0
  %393 = vmatprep.subr.mxu0 0.0
  %394 = vmatpush1.msra.mxu0 0.0
  %395 = vmatprep.subr.mxu0 0.0
  %396 = vmatpush1.msra.mxu0 0.0
  %397 = vmatprep.subr.mxu0 0.0
  %398 = vmatpush1.msra.mxu0 0.0
  %399 = vmatprep.subr.mxu0 0.0
  %400 = vmatpush1.msra.mxu0 0.0
  %401 = vmatprep.subr.mxu0 0.0
  %402 = vmatpush1.msra.mxu0 0.0
  %403 = vmatprep.subr.mxu0 0.0
  %404 = vmatpush1.msra.mxu0 0.0
  %405 = vmatprep.mubr.f32.mxu0 0.0
  %406 = vmatmul.mubr.f32.gmra.mrb[0].mxu0 %v339
  %v407 = vpop.f32.mrb[0].mxu0
  %v408 = vadd.f32 0.0, %v407
  %v409 = vpop.f32.mrb[0].mxu0
  %410 = vdwg.mxu0
  %v411 = vpack.c.bf16 %v408, %v408
  %v412 = vld [vmem:[%s7] sm:$0xf]
  %v413 = vld [vmem:[%s7 + $0x4] sm:$0xf]
  %v414 = vld [vmem:[%s7 + $0x8] sm:$0xf]
  %v415 = vld [vmem:[%s7 + $0xc] sm:$0xf]
  %v416 = vld [vmem:[%s8] sm:$0x1]
  %v418 = vlaneseq
  %v419 = vshrl.u32 %v418, 7
  %v420 = vsub.s32 0, %v419
  %v421 = vrot.slane %v416, %v420
  %v427 = vunpack.c.l.b16 %v412
  %v428 = vunpack.c.l.b16 %v413
  %v429 = vunpack.c.l.b16 %v414
  %v430 = vunpack.c.l.b16 %v415
  %v431 = vpack.c.b16 %v428, %v427
  %v432 = vpack.c.b16 %v430, %v429
  %v436 = vsel %vm329, %v411, 0
  %438 = vmatprep.subr.bf16.mxu0 0
  %439 = vmatpush1.bf16.msra.mxu0 %v431
  %440 = vmatprep.subr.bf16.mxu0 0
  %441 = vmatpush1.bf16.msra.mxu0 %v432
  %442 = vmatprep.subr.bf16.mxu0 0
  %443 = vmatpush1.bf16.msra.mxu0 0
  %444 = vmatprep.subr.bf16.mxu0 0
  %445 = vmatpush1.bf16.msra.mxu0 0
  %446 = vmatprep.subr.bf16.mxu0 0
  %447 = vmatpush1.bf16.msra.mxu0 0
  %448 = vmatprep.subr.bf16.mxu0 0
  %449 = vmatpush1.bf16.msra.mxu0 0
  %450 = vmatprep.subr.bf16.mxu0 0
  %451 = vmatpush1.bf16.msra.mxu0 0
  %452 = vmatprep.subr.bf16.mxu0 0
  %453 = vmatpush1.bf16.msra.mxu0 0
  %454 = vmatprep.subr.bf16.mxu0 0
  %455 = vmatpush1.bf16.msra.mxu0 0
  %456 = vmatprep.subr.bf16.mxu0 0
  %457 = vmatpush1.bf16.msra.mxu0 0
  %458 = vmatprep.subr.bf16.mxu0 0
  %459 = vmatpush1.bf16.msra.mxu0 0
  %460 = vmatprep.subr.bf16.mxu0 0
  %461 = vmatpush1.bf16.msra.mxu0 0
  %462 = vmatprep.subr.bf16.mxu0 0
  %463 = vmatpush1.bf16.msra.mxu0 0
  %464 = vmatprep.subr.bf16.mxu0 0
  %465 = vmatpush1.bf16.msra.mxu0 0
  %466 = vmatprep.subr.bf16.mxu0 0
  %467 = vmatpush1.bf16.msra.mxu0 0
  %468 = vmatprep.subr.bf16.mxu0 0
  %469 = vmatpush1.bf16.msra.mxu0 0
  %470 = vmatprep.mubr.bf16.mxu0 0
  %471 = vmatmul.mubr.bf16.gmra.mrb[0].mxu0 %v436
  %v472 = vpop.f32.mrb[0].mxu0
  %v473 = vadd.f32 %v421, %v472
  %v474 = vpop.f32.mrb[0].mxu0
  %v475 = vpop.f32.mrb[0].mxu0
  %v476 = vpop.f32.mrb[0].mxu0
  %477 = vdwg.mxu0
  %v478 = vld [vmem:[%s3] sm:$0x3]
  %v479 = vlaneseq
  %v480 = vand.u32 %v479, 127
  %v481 = vlaneseq
  %v482 = vshrl.u32 %v481, 7
  %vm483 = vcmp.lt.s32.totalorder %v480, 32
  %v484 = vmax.f32 %v473, 0.0
  %v485 = vmul.f32 %v473, %v478
  %v486 = vsub.f32 %v484, %v485
  %v487 = vand.u32 2147483647, %v473
  %v488 = vsub.f32 0.0, %v487
  %v489 = vmul.f32 %v488, 1.442695
  %v490 = vpow.pop %v489
  %v491 = vadd.f32 %v490, 1.0
  %v492 = vlog2.pop %v491
  %v493 = vmul.f32 %v492, 0.6931472
  %v494 = vmul.f32 -0.5, %v490
  %v495 = vadd.f32 %v494, 1.0
  %v496 = vmul.f32 %v495, %v490
  %v497 = vand.u32 2147483647, %v490
  %vm498 = vcmp.lt.f32.partialorder %v497, 0.0004427343
  %v499 = vsel %vm498, %v496, %v493
  %v500 = vadd.f32 %v486, %v499
  %v501 = vsel %vm483, %v500, 0.0
  %vm502 = vcmask 1041408
  %v503 = vsel %vm502, %v501, 0.0
  %504 = vadd.xlane.f32.xlu0 %v503
  %v505 = vpop.xlane.xlu0 %504
  %v506 = vmul.f32 %v505, 0.03125
  %v507 = vsel %vm483, %v473, -inf
  %v508 = vsel %vm502, %v507, -inf
  %509 = vmax.xlane.f32.xlu0 %v508
  %v510 = vpop.xlane.xlu0 %509
  %vm511 = vcmp.eq.f32.partialorder %v507, %v510
  %v512 = vsel %vm511, %v480, 128
  %v513 = vsel %vm502, %v512, 2147483647
  %v514 = vand.u32 %v513, 65535
  %v515 = vshra.s32 %v513, 16
  %v516 = vcvt.s32.f32 %v514
  %v517 = vcvt.s32.f32 %v515
  %518 = vmin.xlane.f32.xlu0 %v517
  %v519 = vpop.xlane.xlu0 %518
  %vm520 = vcmp.eq.f32.partialorder %v517, %v519
  %v521 = vsel %vm520, %v516, inf
  %522 = vmin.xlane.f32.xlu0 %v521
  %v523 = vpop.xlane.xlu0 %522
  %v524 = vcvt.f32.s32 %v523
  %v525 = vcvt.f32.s32 %v519
  %v526 = vshll.u32 %v525, 16
  %v527 = vadd.s32 %v526, %v524
  %vm528 = vcmp.eq.s32.totalorder %v480, %v527
  %v529 = vsel %vm528, 1, 0
  %v530 = vcvt.s32.f32 %v529
  %v531 = vmul.f32 %v530, %v478
  %v532 = vsel %vm502, %v531, 0.0
  %533 = vadd.xlane.f32.xlu0 %v532
  %v534 = vpop.xlane.xlu0 %533
  %v535 = vsel %vm502, %v506, 0.0
  %v536 = vrot.slane %v535, 4
  %v537 = vadd.f32 %v535, %v536
  %v538 = vrot.slane %v537, 2
  %v539 = vadd.f32 %v537, %v538
  %v540 = vrot.slane %v539, 1
  %v541 = vadd.f32 %v539, %v540
  %v542 = vmul.f32 %v541, 0.5
  %v543 = vsel %vm502, %v534, 0.0
  %v544 = vrot.slane %v543, 4
  %v545 = vadd.f32 %v543, %v544
  %v546 = vrot.slane %v545, 2
  %v547 = vadd.f32 %v545, %v546
  %v548 = vrot.slane %v547, 1
  %v549 = vadd.f32 %v547, %v548
  %v550 = vmul.f32 %v549, 0.5
  %v551 = vsel %vm483, %v473, 0.0
  %vm552 = vcmp.eq.s32.totalorder %v482, 0
  %vm553 = vcmp.eq.s32.totalorder %v480, 32
  %vm554 = vmand %vm552, %vm553
  %v555 = vsel %vm554, %v542, 0.0
  %v556 = vadd.f32 %v551, %v555
  %vm557 = vcmp.eq.s32.totalorder %v480, 33
  %vm558 = vmand %vm552, %vm557
  %v559 = vsel %vm558, %v550, 0.0
  %v560 = vadd.f32 %v556, %v559
  %561 = vst [vmem:[%s9] sm:$0x3] %v560
  // Predicated region
  $region38: #{_forward_train.1} parent=0 // pred_check
    _
  $region39: #{_forward_train.1} parent=0 // pred_check_branch
    %563 = sbr.rel (0) target = $region41
  $region40: #{_forward_train.1} parent=0 // pred_region
    _
  $region41: #{_forward_train.1} parent=0 // pred_fallthru
    _
  // Predicated region
  $region42: #{_forward_train.1} parent=0 // pred_check
    _
  $region43: #{_forward_train.1} parent=0 // pred_check_branch
    %565 = sbr.rel (0) target = $region45
  $region44: #{_forward_train.1} parent=0 // pred_region
    _
  $region45: #{_forward_train.1} parent=0 // pred_fallthru
    _

</llo_original>
